<compile_context>
chip_gen: v7x
topology: tpu7x:2x2x1
jax: 0.10.0
libtpu: 0.0.40
codegen_flags: <defaults>
</compile_context>

<pallas_src>
import functools

import jax
import jax.numpy as jnp
from jax import lax
from jax.experimental import pallas as pl
from jax.experimental.pallas import tpu as pltpu


# ---------------------------------------------------------------------------
# Fused stem kernel: conv1(K,1)+bn1+relu1 -> conv2(1,K)+bn2+relu2
# ---------------------------------------------------------------------------
def _stem_kernel(x_ref, w1_ref, w2_ref, s1_ref, s2_ref, o_ref, xpad_ref, *,
                 K, stride, pad, Hout):
    # x_ref   : [1, H, W*Cin]            bf16 (one batch element, channels in lanes)
    # w1_ref  : [K, W*Cin, W*Cmid]       bf16 (per-tap block-diag over W, BN scale folded)
    # w2_ref  : [W*Cmid, Wout*Cout]      bf16 (W taps + padding + stride folded, BN scale folded)
    # s1_ref  : [1, W*Cmid]   f32  (bn1 shift, tiled over W)
    # s2_ref  : [1, Wout*Cout] f32 (bn2 shift, tiled over Wout)
    # o_ref   : [1, Hout, Wout*Cout] f32
    # xpad_ref: VMEM scratch [H + 2*pad, W*Cin] bf16  (zero-padded rows for conv1)
    H = x_ref.shape[1]

    # Zero-pad the H axis inside VMEM (no HBM padding copy).
    xpad_ref[...] = jnp.zeros_like(xpad_ref)
    xpad_ref[pad:pad + H, :] = x_ref[0]
    xv = xpad_ref[...]

    # conv1 (K,1): K shifted row-slices, each one matmul on the MXU (bf16 in, f32 acc).
    acc1 = jnp.zeros((Hout, w1_ref.shape[2]), jnp.float32)
    for kh in range(K):
        if stride == 1:
            a = xv[kh:kh + Hout]
        else:
            a = xv[kh:kh + stride * (Hout - 1) + 1:stride]
        acc1 = acc1 + jnp.dot(a, w1_ref[kh], preferred_element_type=jnp.float32)

    # bn1 (scale already folded into w1) + relu1; cast once to bf16 for the next matmul.
    mid = jnp.maximum(acc1 + s1_ref[...], 0.0).astype(jnp.bfloat16)   # [Hout, W*Cmid]

    # conv2 (1,K): taps/padding/stride are inside the banded weight -> single matmul.
    acc2 = jnp.dot(mid, w2_ref[...], preferred_element_type=jnp.float32)

    # bn2 + relu2, lane-dense store (last dim = Wout*Cout >= 128).
    o_ref[0] = jnp.maximum(acc2 + s2_ref[...], 0.0)


# ---------------------------------------------------------------------------
# Weight preprocessing (one-time, plain XLA): fold groups + BN scale, pack W.
# ---------------------------------------------------------------------------
def _dense_tap_weight(w_taps, groups, scale):
    """w_taps: [Cout, Cin//groups, K] -> dense [K, Cin, Cout] with group block-diag
    structure and the BN scale folded into the output channels."""
    Cout, Cin_g, K = w_taps.shape
    Cin = Cin_g * groups
    cout_g = Cout // groups
    wd = jnp.zeros((K, Cin, Cout), jnp.float32)
    for g in range(groups):
        blk = w_taps[g * cout_g:(g + 1) * cout_g].transpose(2, 1, 0)  # [K, Cin_g, cout_g]
        wd = wd.at[:, g * Cin_g:(g + 1) * Cin_g,
                   g * cout_g:(g + 1) * cout_g].set(blk.astype(jnp.float32))
    return wd * scale[None, None, :]


# ---------------------------------------------------------------------------
# stemLayers forward (inference)
# ---------------------------------------------------------------------------
def stem_layers_forward(x, params, kernel_size, stride, G, droprate, eps=1e-5):
    (w1, g1, b1, m1, v1, w2, g2, b2, m2, v2) = params
    K = kernel_size
    pad = (K - 1) // 2
    N, Cin, H, W = x.shape
    Cmid = w1.shape[0]
    Cout = w2.shape[0]
    Hout = (H + 2 * pad - K) // stride + 1          # conv1 strides along H
    Wout = (W + 2 * pad - K) // stride + 1          # conv2 strides along W

    # ---- BN folding (inference): scale into weights, shift stays in epilogue ----
    scale1 = g1 / jnp.sqrt(v1 + eps)
    shift1 = b1 - m1 * scale1
    scale2 = g2 / jnp.sqrt(v2 + eps)
    shift2 = b2 - m2 * scale2

    wd1 = _dense_tap_weight(w1[:, :, :, 0], G[0], scale1)   # [K, Cin,  Cmid]
    wd2 = _dense_tap_weight(w2[:, :, 0, :], G[1], scale2)   # [K, Cmid, Cout]

    # conv1: per-tap block-diagonal weight over the W positions packed into lanes.
    eye_w = jnp.eye(W, dtype=jnp.float32)
    w1big = jax.vmap(lambda a: jnp.kron(eye_w, a))(wd1)     # [K, W*Cin, W*Cmid]

    # conv2: fold the K taps, zero padding and W-stride into one banded matrix.
    w2big = jnp.zeros((W * Cmid, Wout * Cout), jnp.float32)
    for wo in range(Wout):
        for kw in range(K):
            wi = wo * stride + kw - pad
            if 0 <= wi < W:
                w2big = w2big.at[wi * Cmid:(wi + 1) * Cmid,
                                 wo * Cout:(wo + 1) * Cout].set(wd2[kw])

    s1t = jnp.tile(shift1, W).reshape(1, W * Cmid).astype(jnp.float32)
    s2t = jnp.tile(shift2, Wout).reshape(1, Wout * Cout).astype(jnp.float32)

    # ---- layout: NCHW -> [N, H, W*Cin] (channels-last, W*C in the lane dim), bf16 ----
    xp = x.transpose(0, 2, 3, 1).reshape(N, H, W * Cin).astype(jnp.bfloat16)
    w1b = w1big.astype(jnp.bfloat16)
    w2b = w2big.astype(jnp.bfloat16)

    kern = functools.partial(_stem_kernel, K=K, stride=stride, pad=pad, Hout=Hout)
    out = pl.pallas_call(
        kern,
        out_shape=jax.ShapeDtypeStruct((N, Hout, Wout * Cout), jnp.float32),
        grid=(N,),
        in_specs=[
            pl.BlockSpec((1, H, W * Cin), lambda n: (n, 0, 0)),          # activation tile
            pl.BlockSpec((K, W * Cin, W * Cmid), lambda n: (0, 0, 0)),   # conv1 weight (stationary)
            pl.BlockSpec((W * Cmid, Wout * Cout), lambda n: (0, 0)),     # conv2 weight (stationary)
            pl.BlockSpec((1, W * Cmid), lambda n: (0, 0)),               # bn1 shift
            pl.BlockSpec((1, Wout * Cout), lambda n: (0, 0)),            # bn2 shift
        ],
        out_specs=pl.BlockSpec((1, Hout, Wout * Cout), lambda n: (n, 0, 0)),
        scratch_shapes=[pltpu.VMEM((H + 2 * pad, W * Cin), jnp.bfloat16)],
        compiler_params=pltpu.CompilerParams(dimension_semantics=("parallel",)),
    )(xp, w1b, w2b, s1t, s2t)

    # dropout sits between relu1 and conv2; eval-mode (droprate=0) is identity.
    # TODO(synk): training-mode dropout (pltpu.prng_random_bits mask) not implemented.

    # [N, Hout, Wout*Cout] -> NHWC (free reshape) -> NCHW for the caller.
    return out.reshape(N, Hout, Wout, Cout).transpose(0, 3, 1, 2)


# ---------------------------------------------------------------------------
# Pure-JAX reference (lax conv) for a correctness check
# ---------------------------------------------------------------------------
def _ref_forward(x, params, kernel_size, stride, G, eps=1e-5):
    (w1, g1, b1, m1, v1, w2, g2, b2, m2, v2) = params
    pad = (kernel_size - 1) // 2
    dn = ("NCHW", "OIHW", "NCHW")

    def bn(y, g, b, m, v):
        return (y - m[None, :, None, None]) / jnp.sqrt(v + eps)[None, :, None, None] \
               * g[None, :, None, None] + b[None, :, None, None]

    y = lax.conv_general_dilated(x, w1, (stride, 1), ((pad, pad), (0, 0)),
                                 dimension_numbers=dn, feature_group_count=G[0])
    y = jnp.maximum(bn(y, g1, b1, m1, v1), 0.0)
    y = lax.conv_general_dilated(y, w2, (1, stride), ((0, 0), (pad, pad)),
                                 dimension_numbers=dn, feature_group_count=G[1])
    y = jnp.maximum(bn(y, g2, b2, m2, v2), 0.0)
    return y


if __name__ == "__main__":
    # Module hyperparameters (consistent with the PyTorch __init__).
    kernel_size = 3
    inchannel, midchannel, outchannel = 4, 8, 16
    G = (1, 1)
    stride = 1
    droprate = 0.0

    key = jax.random.PRNGKey(0)
    keys = jax.random.split(key, 11)

    w1 = 0.1 * jax.random.normal(keys[0], (midchannel, inchannel // G[0], kernel_size, 1), jnp.float32)
    g1 = 1.0 + 0.1 * jax.random.normal(keys[1], (midchannel,), jnp.float32)
    b1 = 0.1 * jax.random.normal(keys[2], (midchannel,), jnp.float32)
    m1 = 0.05 * jax.random.normal(keys[3], (midchannel,), jnp.float32)
    v1 = 1.0 + 0.1 * jax.nn.softplus(jax.random.normal(keys[4], (midchannel,), jnp.float32))

    w2 = 0.1 * jax.random.normal(keys[5], (outchannel, midchannel // G[1], 1, kernel_size), jnp.float32)
    g2 = 1.0 + 0.1 * jax.random.normal(keys[6], (outchannel,), jnp.float32)
    b2 = 0.1 * jax.random.normal(keys[7], (outchannel,), jnp.float32)
    m2 = 0.05 * jax.random.normal(keys[8], (outchannel,), jnp.float32)
    v2 = 1.0 + 0.1 * jax.nn.softplus(jax.random.normal(keys[9], (outchannel,), jnp.float32))

    params = (w1, g1, b1, m1, v1, w2, g2, b2, m2, v2)

    # Input: NCHW, batch=2, channels=4, spatial 16x16.
    x = jax.random.normal(keys[10], (2, inchannel, 16, 16), jnp.float32)

    fwd = jax.jit(lambda x_, p_: stem_layers_forward(x_, p_, kernel_size, stride, G, droprate))
    out = jax.block_until_ready(fwd(x, params))

    ref = jax.block_until_ready(_ref_forward(x, params, kernel_size, stride, G))
    assert out.shape == ref.shape == (2, outchannel, 16, 16)
    # bf16 MXU inputs (per perf review) -> compare with a bf16-appropriate tolerance.
    err = jnp.abs(out - ref)
    assert bool(jnp.all(err <= 5e-2 + 5e-2 * jnp.abs(ref))), \
        f"Pallas kernel mismatch vs reference (max abs err {float(jnp.max(err)):.3e})"

    print("KERNEL_OK")
</pallas_src>

<mosaic_0001>
module attributes {stable_mosaic.version = 11 : i64} {
  func.func @_stem_kernel(%arg0: i32, %arg1: memref<1x16x64xbf16, #tpu.memory_space<vmem>>, %arg2: memref<3x64x128xbf16, #tpu.memory_space<vmem>>, %arg3: memref<128x256xbf16, #tpu.memory_space<vmem>>, %arg4: memref<1x128xf32, #tpu.memory_space<vmem>>, %arg5: memref<1x256xf32, #tpu.memory_space<vmem>>, %arg6: memref<1x16x256xf32, #tpu.memory_space<vmem>>, %arg7: memref<18x64xbf16, #tpu.memory_space<vmem>>) attributes {dimension_semantics = [#tpu.dimension_semantics<parallel>], iteration_bounds = array<i64: 2>, scalar_prefetch = 0 : i64, scratch_operands = 1 : i64, tpu.core_type = #tpu.core_type<tc>, window_params = [{transform_indices = @transform_0, window_bounds = array<i64: 1, 16, 64>}, {pipeline_mode = #tpu.pipeline_mode<synchronous>, transform_indices = @transform_1, window_bounds = array<i64: 3, 64, 128>}, {pipeline_mode = #tpu.pipeline_mode<synchronous>, transform_indices = @transform_2, window_bounds = array<i64: 128, 256>}, {pipeline_mode = #tpu.pipeline_mode<synchronous>, transform_indices = @transform_3, window_bounds = array<i64: 1, 128>}, {pipeline_mode = #tpu.pipeline_mode<synchronous>, transform_indices = @transform_4, window_bounds = array<i64: 1, 256>}, {transform_indices = @transform_5, window_bounds = array<i64: 1, 16, 256>}]} {
    %cst = arith.constant 0.000000e+00 : bf16
    %0 = vector.broadcast %cst : bf16 to vector<18x64xbf16>
    %c0 = arith.constant 0 : index
    %c0_0 = arith.constant 0 : index
    %1 = vector.load %arg7[%c0, %c0_0] : memref<18x64xbf16, #tpu.memory_space<vmem>>, vector<18x64xbf16>
    tpu.vector_store %arg7[%c0, %c0_0], %0 {strides = array<i32>} : memref<18x64xbf16, #tpu.memory_space<vmem>>, vector<18x64xbf16>,
    %c0_1 = arith.constant 0 : index
    %c0_2 = arith.constant 0 : index
    %c0_3 = arith.constant 0 : index
    %2 = vector.load %arg1[%c0_1, %c0_2, %c0_3] : memref<1x16x64xbf16, #tpu.memory_space<vmem>>, vector<1x16x64xbf16>
    %3 = vector.shape_cast %2 : vector<1x16x64xbf16> to vector<16x64xbf16>
    %c1 = arith.constant 1 : index
    %c0_4 = arith.constant 0 : index
    %4 = vector.load %arg7[%c1, %c0_4] : memref<18x64xbf16, #tpu.memory_space<vmem>>, vector<16x64xbf16>
    tpu.vector_store %arg7[%c1, %c0_4], %3 {strides = array<i32>} : memref<18x64xbf16, #tpu.memory_space<vmem>>, vector<16x64xbf16>,
    %c0_5 = arith.constant 0 : index
    %c0_6 = arith.constant 0 : index
    %5 = vector.load %arg7[%c0_5, %c0_6] : memref<18x64xbf16, #tpu.memory_space<vmem>>, vector<18x64xbf16>
    %cst_7 = arith.constant 0.000000e+00 : f32
    %6 = vector.broadcast %cst_7 : f32 to vector<16x128xf32>
    %7 = vector.extract_strided_slice %5 {offsets = [0, 0], sizes = [16, 64], strides = [1, 1]} : vector<18x64xbf16> to vector<16x64xbf16>
    %c0_8 = arith.constant 0 : index
    %c0_9 = arith.constant 0 : index
    %c0_10 = arith.constant 0 : index
    %8 = vector.load %arg2[%c0_8, %c0_9, %c0_10] : memref<3x64x128xbf16, #tpu.memory_space<vmem>>, vector<1x64x128xbf16>
    %9 = vector.shape_cast %8 : vector<1x64x128xbf16> to vector<64x128xbf16>
    %cst_11 = arith.constant dense<0.000000e+00> : vector<16x128xf32>
    %10 = tpu.matmul %7, %9, %cst_11 {dimension_numbers = #tpu.dot_dimension_numbers<[1], [0], [0], [1], [0, 0, 1, 1], [], []>} : vector<16x64xbf16>, vector<64x128xbf16>, vector<16x128xf32> -> vector<16x128xf32>
    %11 = arith.addf %6, %10 : vector<16x128xf32>
    %12 = vector.extract_strided_slice %5 {offsets = [1, 0], sizes = [16, 64], strides = [1, 1]} : vector<18x64xbf16> to vector<16x64xbf16>
    %c1_12 = arith.constant 1 : index
    %c0_13 = arith.constant 0 : index
    %c0_14 = arith.constant 0 : index
    %13 = vector.load %arg2[%c1_12, %c0_13, %c0_14] : memref<3x64x128xbf16, #tpu.memory_space<vmem>>, vector<1x64x128xbf16>
    %14 = vector.shape_cast %13 : vector<1x64x128xbf16> to vector<64x128xbf16>
    %cst_15 = arith.constant dense<0.000000e+00> : vector<16x128xf32>
    %15 = tpu.matmul %12, %14, %cst_15 {dimension_numbers = #tpu.dot_dimension_numbers<[1], [0], [0], [1], [0, 0, 1, 1], [], []>} : vector<16x64xbf16>, vector<64x128xbf16>, vector<16x128xf32> -> vector<16x128xf32>
    %16 = arith.addf %11, %15 : vector<16x128xf32>
    %17 = vector.extract_strided_slice %5 {offsets = [2, 0], sizes = [16, 64], strides = [1, 1]} : vector<18x64xbf16> to vector<16x64xbf16>
    %c2 = arith.constant 2 : index
    %c0_16 = arith.constant 0 : index
    %c0_17 = arith.constant 0 : index
    %18 = vector.load %arg2[%c2, %c0_16, %c0_17] : memref<3x64x128xbf16, #tpu.memory_space<vmem>>, vector<1x64x128xbf16>
    %19 = vector.shape_cast %18 : vector<1x64x128xbf16> to vector<64x128xbf16>
    %cst_18 = arith.constant dense<0.000000e+00> : vector<16x128xf32>
    %20 = tpu.matmul %17, %19, %cst_18 {dimension_numbers = #tpu.dot_dimension_numbers<[1], [0], [0], [1], [0, 0, 1, 1], [], []>} : vector<16x64xbf16>, vector<64x128xbf16>, vector<16x128xf32> -> vector<16x128xf32>
    %21 = arith.addf %16, %20 : vector<16x128xf32>
    %c0_19 = arith.constant 0 : index
    %c0_20 = arith.constant 0 : index
    %22 = vector.load %arg4[%c0_19, %c0_20] : memref<1x128xf32, #tpu.memory_space<vmem>>, vector<1x128xf32>
    %23 = vector.broadcast %22 : vector<1x128xf32> to vector<16x128xf32>
    %24 = arith.addf %21, %23 : vector<16x128xf32>
    %cst_21 = arith.constant 0.000000e+00 : f32
    %25 = vector.broadcast %cst_21 : f32 to vector<16x128xf32>
    %26 = arith.maximumf %24, %25 : vector<16x128xf32>
    %27 = arith.truncf %26 : vector<16x128xf32> to vector<16x128xbf16>
    %c0_22 = arith.constant 0 : index
    %c0_23 = arith.constant 0 : index
    %28 = vector.load %arg3[%c0_22, %c0_23] : memref<128x256xbf16, #tpu.memory_space<vmem>>, vector<128x256xbf16>
    %cst_24 = arith.constant dense<0.000000e+00> : vector<16x256xf32>
    %29 = tpu.matmul %27, %28, %cst_24 {dimension_numbers = #tpu.dot_dimension_numbers<[1], [0], [0], [1], [0, 0, 1, 1], [], []>} : vector<16x128xbf16>, vector<128x256xbf16>, vector<16x256xf32> -> vector<16x256xf32>
    %c0_25 = arith.constant 0 : index
    %c0_26 = arith.constant 0 : index
    %30 = vector.load %arg5[%c0_25, %c0_26] : memref<1x256xf32, #tpu.memory_space<vmem>>, vector<1x256xf32>
    %31 = vector.broadcast %30 : vector<1x256xf32> to vector<16x256xf32>
    %32 = arith.addf %29, %31 : vector<16x256xf32>
    %cst_27 = arith.constant 0.000000e+00 : f32
    %33 = vector.broadcast %cst_27 : f32 to vector<16x256xf32>
    %34 = arith.maximumf %32, %33 : vector<16x256xf32>
    %c0_28 = arith.constant 0 : index
    %c0_29 = arith.constant 0 : index
    %c0_30 = arith.constant 0 : index
    %35 = vector.load %arg6[%c0_28, %c0_29, %c0_30] : memref<1x16x256xf32, #tpu.memory_space<vmem>>, vector<1x16x256xf32>
    %36 = vector.shape_cast %35 : vector<1x16x256xf32> to vector<16x256xf32>
    %37 = vector.shape_cast %34 : vector<16x256xf32> to vector<1x16x256xf32>
    tpu.vector_store %arg6[%c0_28, %c0_29, %c0_30], %37 {strides = array<i32>} : memref<1x16x256xf32, #tpu.memory_space<vmem>>, vector<1x16x256xf32>,
    return
  }
  func.func @transform_0(%arg0: i32) -> (i32, i32, i32) {
    %c0_i32 = arith.constant 0 : i32
    %c0_i32_0 = arith.constant 0 : i32
    %c0_i32_1 = arith.constant 0 : i32
    return %arg0, %c0_i32, %c0_i32_0 : i32, i32, i32
  }
  func.func @transform_1(%arg0: i32) -> (i32, i32, i32) {
    %c0_i32 = arith.constant 0 : i32
    %c0_i32_0 = arith.constant 0 : i32
    %c0_i32_1 = arith.constant 0 : i32
    %c0_i32_2 = arith.constant 0 : i32
    return %c0_i32, %c0_i32_0, %c0_i32_1 : i32, i32, i32
  }
  func.func @transform_2(%arg0: i32) -> (i32, i32) {
    %c0_i32 = arith.constant 0 : i32
    %c0_i32_0 = arith.constant 0 : i32
    %c0_i32_1 = arith.constant 0 : i32
    return %c0_i32, %c0_i32_0 : i32, i32
  }
  func.func @transform_3(%arg0: i32) -> (i32, i32) {
    %c0_i32 = arith.constant 0 : i32
    %c0_i32_0 = arith.constant 0 : i32
    %c0_i32_1 = arith.constant 0 : i32
    return %c0_i32, %c0_i32_0 : i32, i32
  }
  func.func @transform_4(%arg0: i32) -> (i32, i32) {
    %c0_i32 = arith.constant 0 : i32
    %c0_i32_0 = arith.constant 0 : i32
    %c0_i32_1 = arith.constant 0 : i32
    return %c0_i32, %c0_i32_0 : i32, i32
  }
  func.func @transform_5(%arg0: i32) -> (i32, i32, i32) {
    %c0_i32 = arith.constant 0 : i32
    %c0_i32_0 = arith.constant 0 : i32
    %c0_i32_1 = arith.constant 0 : i32
    return %arg0, %c0_i32, %c0_i32_0 : i32, i32, i32
  }
}

</mosaic_0001>

<llo_original>
// kernel: tile.13
$region0: #{tile.13}
  #allocation0 [shape = 's32[1]{0}', space=sflag, size = 0x4, scoped, tag = 'scoped memory for tile.13']
  %s0 = inlined_call_operand.vmem [shape: f32[8], index: 0, kind: input, shape index: {}]
  %s1 = inlined_call_operand.vmem [shape: f32[16,8], index: 1, kind: output, shape index: {}]
  // Predicated region
  $region2: #{tile.13} parent=0 // pred_check
    _
  $region3: #{tile.13} parent=0 // pred_check_branch
    %3 = sbr.rel (0) target = $region5
  $region4: #{tile.13} parent=0 // pred_region
    _
  $region5: #{tile.13} parent=0 // pred_fallthru
    _
  %v4 = vld [vmem:[%s0] ss:$0 sm:$0xff]
  %5 = vst [vmem:[%s1] sm:$0xff] %v4
  %s6 = scalar_lea.vmem %s1, 8
  %7 = vst [vmem:[%s6] sm:$0xff] %v4

// kernel: tile.14
$region0: #{tile.14}
  %s0 = inlined_call_operand.vmem [shape: f32[16,8], index: 0, kind: input, shape index: {}]
  %s1 = inlined_call_operand.vmem [shape: f32[1,128], index: 1, kind: output, shape index: {}]
  $region1: #{tile.14} parent=0
    #allocation0 [shape = 'u8[4096]{0}', space=vmem, size = 0x1000, scoped, tag = 'scoped mem for output reshape']
    %v2 = vld [vmem:[%s0] sm:$0x1]
    %vm3 = vcmask 64512
    %4 = vst.msk [vmem:[#allocation0] sm:$0x1] %vm3, %v2
    %s5 = scalar_lea.vmem %s0, 15
    %v6 = vld [vmem:[%s5] sm:$0x1]
    %7 = vrot.lane.b32.xlu0 %v6, 120
    %v8 = vpop.permute.xlu0 %7
    %vm9 = vcmask 1048512
    %10 = vst.msk [vmem:[#allocation0] sm:$0x1] %vm9, %v8
    %s11 = scalar_lea.vmem %s0, 14
    %v12 = vld [vmem:[%s11] sm:$0x1]
    %13 = vrot.lane.b32.xlu0 %v12, 112
    %v14 = vpop.permute.xlu0 %13
    %vm15 = vcmask 982912
    %16 = vst.msk [vmem:[#allocation0] sm:$0x1] %vm15, %v14
    %s17 = scalar_lea.vmem %s0, 13
    %v18 = vld [vmem:[%s17] sm:$0x1]
    %19 = vrot.lane.b32.xlu0 %v18, 104
    %v20 = vpop.permute.xlu0 %19
    %vm21 = vcmask 917312
    %22 = vst.msk [vmem:[#allocation0] sm:$0x1] %vm21, %v20
    %s23 = scalar_lea.vmem %s0, 12
    %v24 = vld [vmem:[%s23] sm:$0x1]
    %25 = vrot.lane.b32.xlu0 %v24, 96
    %v26 = vpop.permute.xlu0 %25
    %vm27 = vcmask 851712
    %28 = vst.msk [vmem:[#allocation0] sm:$0x1] %vm27, %v26
    %s29 = scalar_lea.vmem %s0, 11
    %v30 = vld [vmem:[%s29] sm:$0x1]
    %31 = vrot.lane.b32.xlu0 %v30, 88
    %v32 = vpop.permute.xlu0 %31
    %vm33 = vcmask 786112
    %34 = vst.msk [vmem:[#allocation0] sm:$0x1] %vm33, %v32
    %s35 = scalar_lea.vmem %s0, 10
    %v36 = vld [vmem:[%s35] sm:$0x1]
    %37 = vrot.lane.b32.xlu0 %v36, 80
    %v38 = vpop.permute.xlu0 %37
    %vm39 = vcmask 720512
    %40 = vst.msk [vmem:[#allocation0] sm:$0x1] %vm39, %v38
    %s41 = scalar_lea.vmem %s0, 9
    %v42 = vld [vmem:[%s41] sm:$0x1]
    %43 = vrot.lane.b32.xlu0 %v42, 72
    %v44 = vpop.permute.xlu0 %43
    %vm45 = vcmask 654912
    %46 = vst.msk [vmem:[#allocation0] sm:$0x1] %vm45, %v44
    %s47 = scalar_lea.vmem %s0, 8
    %v48 = vld [vmem:[%s47] sm:$0x1]
    %49 = vrot.lane.b32.xlu0 %v48, 64
    %v50 = vpop.permute.xlu0 %49
    %vm51 = vcmask 589312
    %52 = vst.msk [vmem:[#allocation0] sm:$0x1] %vm51, %v50
    %s53 = scalar_lea.vmem %s0, 7
    %v54 = vld [vmem:[%s53] sm:$0x1]
    %55 = vrot.lane.b32.xlu0 %v54, 56
    %v56 = vpop.permute.xlu0 %55
    %vm57 = vcmask 523712
    %58 = vst.msk [vmem:[#allocation0] sm:$0x1] %vm57, %v56
    %s59 = scalar_lea.vmem %s0, 6
    %v60 = vld [vmem:[%s59] sm:$0x1]
    %61 = vrot.lane.b32.xlu0 %v60, 48
    %v62 = vpop.permute.xlu0 %61
    %vm63 = vcmask 458112
    %64 = vst.msk [vmem:[#allocation0] sm:$0x1] %vm63, %v62
    %s65 = scalar_lea.vmem %s0, 5
    %v66 = vld [vmem:[%s65] sm:$0x1]
    %67 = vrot.lane.b32.xlu0 %v66, 40
    %v68 = vpop.permute.xlu0 %67
    %vm69 = vcmask 392512
    %70 = vst.msk [vmem:[#allocation0] sm:$0x1] %vm69, %v68
    %s71 = scalar_lea.vmem %s0, 4
    %v72 = vld [vmem:[%s71] sm:$0x1]
    %73 = vrot.lane.b32.xlu0 %v72, 32
    %v74 = vpop.permute.xlu0 %73
    %vm75 = vcmask 326912
    %76 = vst.msk [vmem:[#allocation0] sm:$0x1] %vm75, %v74
    %s77 = scalar_lea.vmem %s0, 3
    %v78 = vld [vmem:[%s77] sm:$0x1]
    %79 = vrot.lane.b32.xlu0 %v78, 24
    %v80 = vpop.permute.xlu0 %79
    %vm81 = vcmask 261312
    %82 = vst.msk [vmem:[#allocation0] sm:$0x1] %vm81, %v80
    %s83 = scalar_lea.vmem %s0, 2
    %v84 = vld [vmem:[%s83] sm:$0x1]
    %85 = vrot.lane.b32.xlu0 %v84, 16
    %v86 = vpop.permute.xlu0 %85
    %vm87 = vcmask 195712
    %88 = vst.msk [vmem:[#allocation0] sm:$0x1] %vm87, %v86
    %s89 = scalar_lea.vmem %s0, 1
    %v90 = vld [vmem:[%s89] sm:$0x1]
    %91 = vrot.lane.b32.xlu0 %v90, 8
    %v92 = vpop.permute.xlu0 %91
    %vm93 = vcmask 130112
    %94 = vst.msk [vmem:[#allocation0] sm:$0x1] %vm93, %v92
    %s96 = sshllo.u32 0, 1
    %v98 = vld [vmem:[#allocation0] sm:%s96]
    %s99 = sshllo.u32 0, 1
    %100 = vst [vmem:[%s1] sm:%s99] %v98

// kernel: tile.18
$region0: #{tile.18}
  #allocation0 [shape = 's32[1]{0}', space=sflag, size = 0x4, scoped, tag = 'scoped memory for tile.18']
  %s0 = inlined_call_operand.vmem [shape: f32[16], index: 0, kind: input, shape index: {}]
  %s1 = inlined_call_operand.vmem [shape: f32[16,16], index: 1, kind: output, shape index: {}]
  // Predicated region
  $region2: #{tile.18} parent=0 // pred_check
    _
  $region3: #{tile.18} parent=0 // pred_check_branch
    %3 = sbr.rel (0) target = $region5
  $region4: #{tile.18} parent=0 // pred_region
    _
  $region5: #{tile.18} parent=0 // pred_fallthru
    _
  %v4 = vld [vmem:[%s0] ss:$0 sm:$0xff]
  %5 = vst [vmem:[%s1] sm:$0xff] %v4
  %s6 = scalar_lea.vmem %s1, 8
  %7 = vst [vmem:[%s6] sm:$0xff] %v4

// kernel: tile.19
$region0: #{tile.19}
  %s0 = inlined_call_operand.vmem [shape: f32[16,16], index: 0, kind: input, shape index: {}]
  %s1 = inlined_call_operand.vmem [shape: f32[1,256], index: 1, kind: output, shape index: {}]
  $region1: #{tile.19} parent=0
    #allocation0 [shape = 'u8[8192]{0}', space=vmem, size = 0x2000, scoped, tag = 'scoped mem for output reshape']
    %s2 = smov 3
    %v3 = vld [vmem:[%s0] ss:$8 sm:%s2]
    %vm4 = vcmask 130048
    %5 = vst.msk [vmem:[#allocation0] ss:$8 sm:$0x3] %vm4, %v3
    %s6 = scalar_lea.vmem %s0, 7
    %s7 = smov 3
    %v8 = vld [vmem:[%s6] ss:$8 sm:%s7]
    %9 = vrot.lane.b32.xlu0 %v8, 112
    %v10 = vpop.permute.xlu0 %9
    %vm11 = vcmask 1048448
    %12 = vst.msk [vmem:[#allocation0] ss:$8 sm:$0x3] %vm11, %v10
    %s13 = scalar_lea.vmem %s0, 6
    %s14 = smov 3
    %v15 = vld [vmem:[%s13] ss:$8 sm:%s14]
    %16 = vrot.lane.b32.xlu0 %v15, 96
    %v17 = vpop.permute.xlu0 %16
    %vm18 = vcmask 917248
    %19 = vst.msk [vmem:[#allocation0] ss:$8 sm:$0x3] %vm18, %v17
    %s20 = scalar_lea.vmem %s0, 5
    %s21 = smov 3
    %v22 = vld [vmem:[%s20] ss:$8 sm:%s21]
    %23 = vrot.lane.b32.xlu0 %v22, 80
    %v24 = vpop.permute.xlu0 %23
    %vm25 = vcmask 786048
    %26 = vst.msk [vmem:[#allocation0] ss:$8 sm:$0x3] %vm25, %v24
    %s27 = scalar_lea.vmem %s0, 4
    %s28 = smov 3
    %v29 = vld [vmem:[%s27] ss:$8 sm:%s28]
    %30 = vrot.lane.b32.xlu0 %v29, 64
    %v31 = vpop.permute.xlu0 %30
    %vm32 = vcmask 654848
    %33 = vst.msk [vmem:[#allocation0] ss:$8 sm:$0x3] %vm32, %v31
    %s34 = scalar_lea.vmem %s0, 3
    %s35 = smov 3
    %v36 = vld [vmem:[%s34] ss:$8 sm:%s35]
    %37 = vrot.lane.b32.xlu0 %v36, 48
    %v38 = vpop.permute.xlu0 %37
    %vm39 = vcmask 523648
    %40 = vst.msk [vmem:[#allocation0] ss:$8 sm:$0x3] %vm39, %v38
    %s41 = scalar_lea.vmem %s0, 2
    %s42 = smov 3
    %v43 = vld [vmem:[%s41] ss:$8 sm:%s42]
    %44 = vrot.lane.b32.xlu0 %v43, 32
    %v45 = vpop.permute.xlu0 %44
    %vm46 = vcmask 392448
    %47 = vst.msk [vmem:[#allocation0] ss:$8 sm:$0x3] %vm46, %v45
    %s48 = scalar_lea.vmem %s0, 1
    %s49 = smov 3
    %v50 = vld [vmem:[%s48] ss:$8 sm:%s49]
    %51 = vrot.lane.b32.xlu0 %v50, 16
    %v52 = vpop.permute.xlu0 %51
    %vm53 = vcmask 261248
    %54 = vst.msk [vmem:[#allocation0] ss:$8 sm:$0x3] %vm53, %v52
    %s56 = sshllo.u32 0, 1
    %v58 = vld [vmem:[#allocation0] sm:%s56]
    %s59 = sshllo.u32 0, 1
    %60 = vst [vmem:[%s1] sm:%s59] %v58
    %s61 = scalar_lea.vmem [#allocation0], 8
    %v62 = vld [vmem:[%s61] sm:%s56]
    %s63 = sshllo.u32 0, 1
    %s64 = scalar_lea.vmem %s1, 1
    %65 = vst [vmem:[%s64] sm:%s63] %v62

// kernel: _lambda_.1
$region0: #{_lambda_.1}
  #allocation0 [shape = 'u32[]', space=smem, size = 0x4, offset = 0x4, fixed_abs, tag = 'smem constant byte address 0x4 - core index']
  #allocation1 [shape = 'u32[144,128]{1,0:T(1,128)}', space=vmem, size = 0x12000, scoped, tag = 'internal scratch']
  #allocation2 [shape = 'bf16[18,64]{1,0:T(8,128)(2,1)}', space=vmem, size = 0x1800, scoped, tag = 'scratch operand']
  %s0 = inlined_call_operand.vmem [shape: bf16[2,16,64], index: 0, kind: input, shape index: {}]
  %s1 = inlined_call_operand.vmem [shape: bf16[3,64,128], index: 1, kind: input, shape index: {}]
  %s2 = inlined_call_operand.vmem [shape: bf16[128,256], index: 2, kind: input, shape index: {}]
  %s3 = inlined_call_operand.vmem [shape: f32[1,128], index: 3, kind: input, shape index: {}]
  %s4 = inlined_call_operand.vmem [shape: f32[1,256], index: 4, kind: input, shape index: {}]
  %s5 = inlined_call_operand.vmem [shape: f32[2,16,256], index: 5, kind: output, shape index: {}]
  %s6 = sld [smem:[#allocation0]]
  $region53: #{_lambda_.1} parent=0
    _
  %s8 = ssub.s32 1, %s6
  %s9 = scalar_select 0, %s8, %s6
  loop: start=0, step=1, limit=4
  $region2: #{_lambda_.1} parent=0 // loop_pre_header
    _
  $region3: #{_lambda_.1} parent=0 // loop_header
    %s11 = sphi 0, %s15
    %p12 = scmp.ge.s32.totalorder %s11, 4
    %s21 = sphi 0, %s23
    %s24 = sphi 0, %s21
    %s25 = sphi 0, %s24
    %s41 = sphi 0, %s25
    %s45 = sphi 0, %s45
    %s47 = sphi 0, %s45
    %s48 = sphi 0, %s47
    %s62 = sphi 0, %s48
    %s66 = sphi 0, %s66
    %s68 = sphi 0, %s66
    %s69 = sphi 0, %s68
    %s83 = sphi 0, %s69
    %s87 = sphi 0, %s87
    %s89 = sphi 0, %s87
    %s90 = sphi 0, %s89
    %s104 = sphi 0, %s90
    %s108 = sphi 0, %s108
    %s110 = sphi 0, %s108
    %s111 = sphi 0, %s110
    %s125 = sphi 0, %s111
    %s131 = sphi 0, %s133
    %s134 = sphi 0, %s131
    %s135 = sphi 0, %s134
    %s151 = sphi 0, %s135
  $region4: #{_lambda_.1} parent=0 // loop_header_branch
    %14 = sbr.rel (%p12) target = $region8
  $region5: #{_lambda_.1} parent=0 // loop_body
    %s16 = ssub.s32 %s11, 1
    %s17 = ssub.s32 %s11, 2
    %s18 = sadd.s32 %s11, 1
    %s19 = ssub.s32 %s11, %s18
    %p20 = scmp.eq.s32.totalorder %s19, 0
    %s22 = sadd.s32 %s21, 1
    %s23 = scalar_select %p20, %s21, %s22
    %p26 = pneg %p20
    %p27 = scmp.eq.s32.totalorder %s11, 1
    %p28 = por %p26, %p27
    %p29 = scmp.ne.s32.totalorder %s21, %s24
    %p30 = scmp.eq.s32.totalorder %s11, 0
    %p31 = por %p29, %p30
    %p32 = scmp.ne.s32.totalorder %s21, %s24
    %p33 = scmp.eq.s32.totalorder %s16, 1
    %p34 = por %p32, %p33
    %p35 = scmp.ne.s32.totalorder %s24, %s25
    %p36 = scmp.eq.s32.totalorder %s16, 0
    %p37 = por %p35, %p36
    %p38 = scmp.ne.s32.totalorder %s24, %s25
    %p39 = scmp.eq.s32.totalorder %s17, 1
    %p40 = por %p38, %p39
    %p42 = scmp.ne.s32.totalorder %s25, %s41
    %p43 = scmp.eq.s32.totalorder %s17, 0
    %p44 = por %p42, %p43
    %s46 = sadd.s32 %s45, 1
    %p49 = scmp.eq.s32.totalorder %s11, 1
    %p50 = scmp.ne.s32.totalorder %s45, %s47
    %p51 = scmp.eq.s32.totalorder %s11, 0
    %p52 = por %p50, %p51
    %p53 = scmp.ne.s32.totalorder %s45, %s47
    %p54 = scmp.eq.s32.totalorder %s16, 1
    %p55 = por %p53, %p54
    %p56 = scmp.ne.s32.totalorder %s47, %s48
    %p57 = scmp.eq.s32.totalorder %s16, 0
    %p58 = por %p56, %p57
    %p59 = scmp.ne.s32.totalorder %s47, %s48
    %p60 = scmp.eq.s32.totalorder %s17, 1
    %p61 = por %p59, %p60
    %p63 = scmp.ne.s32.totalorder %s48, %s62
    %p64 = scmp.eq.s32.totalorder %s17, 0
    %p65 = por %p63, %p64
    %s67 = sadd.s32 %s66, 1
    %p70 = scmp.eq.s32.totalorder %s11, 1
    %p71 = scmp.ne.s32.totalorder %s66, %s68
    %p72 = scmp.eq.s32.totalorder %s11, 0
    %p73 = por %p71, %p72
    %p74 = scmp.ne.s32.totalorder %s66, %s68
    %p75 = scmp.eq.s32.totalorder %s16, 1
    %p76 = por %p74, %p75
    %p77 = scmp.ne.s32.totalorder %s68, %s69
    %p78 = scmp.eq.s32.totalorder %s16, 0
    %p79 = por %p77, %p78
    %p80 = scmp.ne.s32.totalorder %s68, %s69
    %p81 = scmp.eq.s32.totalorder %s17, 1
    %p82 = por %p80, %p81
    %p84 = scmp.ne.s32.totalorder %s69, %s83
    %p85 = scmp.eq.s32.totalorder %s17, 0
    %p86 = por %p84, %p85
    %s88 = sadd.s32 %s87, 1
    %p91 = scmp.eq.s32.totalorder %s11, 1
    %p92 = scmp.ne.s32.totalorder %s87, %s89
    %p93 = scmp.eq.s32.totalorder %s11, 0
    %p94 = por %p92, %p93
    %p95 = scmp.ne.s32.totalorder %s87, %s89
    %p96 = scmp.eq.s32.totalorder %s16, 1
    %p97 = por %p95, %p96
    %p98 = scmp.ne.s32.totalorder %s89, %s90
    %p99 = scmp.eq.s32.totalorder %s16, 0
    %p100 = por %p98, %p99
    %p101 = scmp.ne.s32.totalorder %s89, %s90
    %p102 = scmp.eq.s32.totalorder %s17, 1
    %p103 = por %p101, %p102
    %p105 = scmp.ne.s32.totalorder %s90, %s104
    %p106 = scmp.eq.s32.totalorder %s17, 0
    %p107 = por %p105, %p106
    %s109 = sadd.s32 %s108, 1
    %p112 = scmp.eq.s32.totalorder %s11, 1
    %p113 = scmp.ne.s32.totalorder %s108, %s110
    %p114 = scmp.eq.s32.totalorder %s11, 0
    %p115 = por %p113, %p114
    %p116 = scmp.ne.s32.totalorder %s108, %s110
    %p117 = scmp.eq.s32.totalorder %s16, 1
    %p118 = por %p116, %p117
    %p119 = scmp.ne.s32.totalorder %s110, %s111
    %p120 = scmp.eq.s32.totalorder %s16, 0
    %p121 = por %p119, %p120
    %p122 = scmp.ne.s32.totalorder %s110, %s111
    %p123 = scmp.eq.s32.totalorder %s17, 1
    %p124 = por %p122, %p123
    %p126 = scmp.ne.s32.totalorder %s111, %s125
    %p127 = scmp.eq.s32.totalorder %s17, 0
    %p128 = por %p126, %p127
    %s129 = ssub.s32 %s11, %s18
    %p130 = scmp.eq.s32.totalorder %s129, 0
    %s132 = sadd.s32 %s131, 1
    %s133 = scalar_select %p130, %s131, %s132
    %p136 = pneg %p130
    %p137 = scmp.eq.s32.totalorder %s11, 1
    %p138 = por %p136, %p137
    %p139 = scmp.ne.s32.totalorder %s131, %s134
    %p140 = scmp.eq.s32.totalorder %s11, 0
    %p141 = por %p139, %p140
    %p142 = scmp.ne.s32.totalorder %s131, %s134
    %p143 = scmp.eq.s32.totalorder %s16, 1
    %p144 = por %p142, %p143
    %p145 = scmp.ne.s32.totalorder %s134, %s135
    %p146 = scmp.eq.s32.totalorder %s16, 0
    %p147 = por %p145, %p146
    %p148 = scmp.ne.s32.totalorder %s134, %s135
    %p149 = scmp.eq.s32.totalorder %s17, 1
    %p150 = por %p148, %p149
    %p152 = scmp.ne.s32.totalorder %s135, %s151
    %p153 = scmp.eq.s32.totalorder %s17, 0
    %p154 = por %p152, %p153
    %p155 = scmp.le.s32.totalorder 1, %s11
    %p156 = scmp.lt.s32.totalorder %s11, 3
    %p157 = pnand %p155, %p156
    %p158 = pneg %p157
    // Predicated region
    $region9: #{_lambda_.1} parent=5 // pred_check
      _
    $region10: #{_lambda_.1} parent=5 // pred_check_branch
      %160 = sbr.rel (%p157) target = $region12
    $region11: #{_lambda_.1} parent=5 // pred_region
      %s161 = ssub.s32 %s11, 1
      // Predicated region
      $region13: #{_lambda_.1} parent=11 // pred_check
        %p162 = pneg %p58
      $region14: #{_lambda_.1} parent=11 // pred_check_branch
        %164 = sbr.rel (%p162) target = $region16
      $region15: #{_lambda_.1} parent=11 // pred_region
        _
      $region16: #{_lambda_.1} parent=11 // pred_fallthru
        _
      // Predicated region
      $region17: #{_lambda_.1} parent=11 // pred_check
        %p165 = pneg %p79
      $region18: #{_lambda_.1} parent=11 // pred_check_branch
        %167 = sbr.rel (%p165) target = $region20
      $region19: #{_lambda_.1} parent=11 // pred_region
        _
      $region20: #{_lambda_.1} parent=11 // pred_fallthru
        _
      // Predicated region
      $region21: #{_lambda_.1} parent=11 // pred_check
        %p168 = pneg %p100
      $region22: #{_lambda_.1} parent=11 // pred_check_branch
        %170 = sbr.rel (%p168) target = $region24
      $region23: #{_lambda_.1} parent=11 // pred_region
        _
      $region24: #{_lambda_.1} parent=11 // pred_fallthru
        _
      // Predicated region
      $region25: #{_lambda_.1} parent=11 // pred_check
        %p171 = pneg %p121
      $region26: #{_lambda_.1} parent=11 // pred_check_branch
        %173 = sbr.rel (%p171) target = $region28
      $region27: #{_lambda_.1} parent=11 // pred_region
        _
      $region28: #{_lambda_.1} parent=11 // pred_fallthru
        _
    $region12: #{_lambda_.1} parent=5 // pred_fallthru
      _
    %p174 = scmp.lt.s32.totalorder %s11, 2
    // Predicated region
    $region29: #{_lambda_.1} parent=5 // pred_check
      %p175 = pneg %p174
    $region30: #{_lambda_.1} parent=5 // pred_check_branch
      %177 = sbr.rel (%p175) target = $region32
    $region31: #{_lambda_.1} parent=5 // pred_region
      // Predicated region
      $region33: #{_lambda_.1} parent=31 // pred_check
        %p178 = pneg %p31
      $region34: #{_lambda_.1} parent=31 // pred_check_branch
        %180 = sbr.rel (%p178) target = $region36
      $region35: #{_lambda_.1} parent=31 // pred_region
        %p181 = scmp.lt.s32.totalorder %s11, 1
        %s182 = scalar_select %p181, %s11, 1
        %s183 = smul.addr %s182, 2
        %s184 = smul.addr %s183, 4
        %s185 = scalar_lea.vmem %s0, %s184
      $region36: #{_lambda_.1} parent=31 // pred_fallthru
        _
    $region32: #{_lambda_.1} parent=5 // pred_fallthru
      _
    %p186 = scmp.le.s32.totalorder 1, %s11
    %p187 = scmp.lt.s32.totalorder %s11, 3
    %p188 = pnand %p186, %p187
    %p189 = pneg %p188
    // Predicated region
    $region37: #{_lambda_.1} parent=5 // pred_check
      _
    $region38: #{_lambda_.1} parent=5 // pred_check_branch
      %191 = sbr.rel (%p188) target = $region40
    $region39: #{_lambda_.1} parent=5 // pred_region
      %s192 = ssub.s32 %s11, 1
      %p193 = scmp.lt.s32.totalorder %s16, 1
      %s194 = scalar_select %p193, %s16, 1
      %s195 = smul.addr %s194, 2
      %s196 = smul.addr %s195, 4
      %s197 = scalar_lea.vmem %s0, %s196
      %p198 = pneg %p37
      %p199 = pneg %p34
      %p200 = pneg %p58
      %p201 = pneg %p55
      %p202 = pneg %p79
      %p203 = pneg %p76
      %p204 = pneg %p100
      %p205 = pneg %p97
      %p206 = pneg %p121
      %p207 = pneg %p118
      %p208 = pneg %p147
      %p209 = pneg %p144
      %p210 = scmp.lt.s32.totalorder %s16, 1
      %s211 = scalar_select %p210, %s16, 1
      %s212 = smul.addr %s211, 4
      %s213 = smul.addr %s212, 8
      %s214 = scalar_lea.vmem %s5, %s213
      %p215 = scmp.lt.s32.totalorder %s16, 1
      %s216 = scalar_select %p215, %s16, 1
      %s217 = smul.addr %s216, 2
      %s218 = smul.addr %s217, 4
      %s219 = scalar_lea.vmem %s0, %s218
      %p220 = scmp.lt.s32.totalorder %s16, 1
      %s221 = scalar_select %p220, %s16, 1
      %s222 = smul.addr %s221, 4
      %s223 = smul.addr %s222, 8
      %s224 = scalar_lea.vmem %s5, %s223
      %vm226 = vcmask 519168
      %227 = vst.msk [vmem:[#allocation2] sm:$0xf] %vm226, 0
      %228 = vst.msk [vmem:[#allocation2 + $0x4] sm:$0xf] %vm226, 0
      %vm229 = vcmask 516096
      %230 = vst.msk [vmem:[#allocation2 + $0x8] sm:$0x1] %vm229, 0
      %v231 = vld [vmem:[%s219] sm:$0xf]
      %v232 = vld [vmem:[%s219 + $0x4] sm:$0xf]
      %vm233 = vsmask.f32 256
      %vm234 = vsmask.f32 4368
      %vm235 = vmor %vm233, %vm234
      %v237 = vshrl.u32 %v231, 16
      %v239 = vrot.slane %v237, 7
      %v240 = vshll.u32 %v231, 16
      %v242 = vor.u32 %v239, %v240
      %v243 = vrot.slane %v239, 4
      %v245 = vshrl.u32 %v232, 16
      %v247 = vrot.slane %v245, 7
      %v248 = vshll.u32 %v232, 16
      %v250 = vor.u32 %v247, %v248
      %v251 = vsel %vm235, %v243, %v250
      %v252 = vrot.slane %v247, 4
      %vm256 = vcmask 519168
      %vm257 = vsmask.f32 7938
      %vm258 = vmand %vm256, %vm257
      %v259 = vld [vmem:[#allocation2] sm:$0xf]
      %v260 = vsel %vm258, %v242, %v259
      %261 = vst [vmem:[#allocation2] sm:$0xf] %v260
      %262 = vst.msk [vmem:[#allocation2 + $0x4] sm:$0xf] %vm226, %v251
      %vm263 = vcmask 516096
      %vm264 = vmand %vm263, %vm233
      %v265 = vld [vmem:[#allocation2 + $0x8] sm:$0x1]
      %v266 = vsel %vm264, %v252, %v265
      %267 = vst [vmem:[#allocation2 + $0x8] sm:$0x1] %v266
      %v268 = vld [vmem:[#allocation2] sm:$0xf]
      %v269 = vld [vmem:[#allocation2 + $0x4] sm:$0xf]
      %v270 = vld [vmem:[#allocation2 + $0x8] sm:$0x1]
      %v271 = vld [vmem:[%s1] sm:$0xf]
      %v272 = vld [vmem:[%s1 + $0x4] sm:$0xf]
      %v273 = vld [vmem:[%s1 + $0x8] sm:$0xf]
      %v274 = vld [vmem:[%s1 + $0xc] sm:$0xf]
      %v275 = vld [vmem:[%s1 + $0x10] sm:$0xf]
      %v276 = vld [vmem:[%s1 + $0x14] sm:$0xf]
      %v277 = vld [vmem:[%s1 + $0x18] sm:$0xf]
      %v278 = vld [vmem:[%s1 + $0x1c] sm:$0xf]
      %s279 = scalar_lea.vmem %s1, 32
      %v280 = vld [vmem:[%s279] sm:$0xf]
      %v281 = vld [vmem:[%s279 + $0x4] sm:$0xf]
      %v282 = vld [vmem:[%s279 + $0x8] sm:$0xf]
      %v283 = vld [vmem:[%s279 + $0xc] sm:$0xf]
      %v284 = vld [vmem:[%s279 + $0x10] sm:$0xf]
      %v285 = vld [vmem:[%s279 + $0x14] sm:$0xf]
      %v286 = vld [vmem:[%s279 + $0x18] sm:$0xf]
      %v287 = vld [vmem:[%s279 + $0x1c] sm:$0xf]
      %v291 = vunpack.c.l.b16 %v268
      %v292 = vunpack.c.l.b16 %v269
      %v293 = vunpack.c.l.b16 %v270
      %v294 = vpack.c.b16 %v292, %v291
      %v295 = vpack.c.b16 %v293, %v293
      %vm296 = vsmask.f32 7424
      %v298 = vshrl.u32 %v294, 16
      %v300 = vshll.u32 %v294, 16
      %v302 = vrot.slane %v300, 1
      %v303 = vor.u32 %v298, %v302
      %v305 = vshll.u32 %v295, 16
      %v307 = vrot.slane %v305, 1
      %v308 = vsel %vm296, %v303, %v307
      %v317 = vunpack.c.l.b16 %v280
      %v318 = vunpack.c.l.b16 %v281
      %v319 = vunpack.c.l.b16 %v282
      %v320 = vunpack.c.l.b16 %v283
      %v321 = vunpack.c.l.b16 %v284
      %v322 = vunpack.c.l.b16 %v285
      %v323 = vunpack.c.l.b16 %v286
      %v324 = vunpack.c.l.b16 %v287
      %v325 = vpack.c.b16 %v318, %v317
      %v326 = vpack.c.b16 %v320, %v319
      %v327 = vpack.c.b16 %v322, %v321
      %v328 = vpack.c.b16 %v324, %v323
      %vm333 = vcmask 523264
      %v335 = vsel %vm333, %v308, 0
      %337 = vmatprep.subr.bf16.mxu0 0
      %338 = vmatpush1.bf16.msra.mxu0 %v325
      %339 = vmatprep.subr.bf16.mxu0 0
      %340 = vmatpush1.bf16.msra.mxu0 %v326
      %341 = vmatprep.subr.bf16.mxu0 0
      %342 = vmatpush1.bf16.msra.mxu0 %v327
      %343 = vmatprep.subr.bf16.mxu0 0
      %344 = vmatpush1.bf16.msra.mxu0 %v328
      %345 = vmatprep.subr.bf16.mxu0 0
      %346 = vmatpush1.bf16.msra.mxu0 0
      %347 = vmatprep.subr.bf16.mxu0 0
      %348 = vmatpush1.bf16.msra.mxu0 0
      %349 = vmatprep.subr.bf16.mxu0 0
      %350 = vmatpush1.bf16.msra.mxu0 0
      %351 = vmatprep.subr.bf16.mxu0 0
      %352 = vmatpush1.bf16.msra.mxu0 0
      %353 = vmatprep.subr.bf16.mxu0 0
      %354 = vmatpush1.bf16.msra.mxu0 0
      %355 = vmatprep.subr.bf16.mxu0 0
      %356 = vmatpush1.bf16.msra.mxu0 0
      %357 = vmatprep.subr.bf16.mxu0 0
      %358 = vmatpush1.bf16.msra.mxu0 0
      %359 = vmatprep.subr.bf16.mxu0 0
      %360 = vmatpush1.bf16.msra.mxu0 0
      %361 = vmatprep.subr.bf16.mxu0 0
      %362 = vmatpush1.bf16.msra.mxu0 0
      %363 = vmatprep.subr.bf16.mxu0 0
      %364 = vmatpush1.bf16.msra.mxu0 0
      %365 = vmatprep.subr.bf16.mxu0 0
      %366 = vmatpush1.bf16.msra.mxu0 0
      %367 = vmatprep.subr.bf16.mxu0 0
      %368 = vmatpush1.bf16.msra.mxu0 0
      %369 = vmatprep.mubr.bf16.mxu0 0
      %370 = vmatmul.mubr.bf16.gmra.mrb[0].mxu0 %v335
      %v371 = vpop.f32.mrb[0].mxu0
      %v372 = vadd.f32 0.0, %v371
      %v373 = vpop.f32.mrb[0].mxu0
      %v374 = vpop.f32.mrb[0].mxu0
      %v375 = vadd.f32 0.0, %v374
      %v376 = vpop.f32.mrb[0].mxu0
      %377 = vdwg.mxu0
      %v386 = vunpack.c.l.b16 %v271
      %v387 = vunpack.c.l.b16 %v272
      %v388 = vunpack.c.l.b16 %v273
      %v389 = vunpack.c.l.b16 %v274
      %v390 = vunpack.c.l.b16 %v275
      %v391 = vunpack.c.l.b16 %v276
      %v392 = vunpack.c.l.b16 %v277
      %v393 = vunpack.c.l.b16 %v278
      %v394 = vpack.c.b16 %v387, %v386
      %v395 = vpack.c.b16 %v389, %v388
      %v396 = vpack.c.b16 %v391, %v390
      %v397 = vpack.c.b16 %v393, %v392
      %v402 = vsel %vm333, %v294, 0
      %404 = vmatprep.subr.bf16.mxu0 0
      %405 = vmatpush1.bf16.msra.mxu0 %v394
      %406 = vmatprep.subr.bf16.mxu0 0
      %407 = vmatpush1.bf16.msra.mxu0 %v395
      %408 = vmatprep.subr.bf16.mxu0 0
      %409 = vmatpush1.bf16.msra.mxu0 %v396
      %410 = vmatprep.subr.bf16.mxu0 0
      %411 = vmatpush1.bf16.msra.mxu0 %v397
      %412 = vmatprep.subr.bf16.mxu0 0
      %413 = vmatpush1.bf16.msra.mxu0 0
      %414 = vmatprep.subr.bf16.mxu0 0
      %415 = vmatpush1.bf16.msra.mxu0 0
      %416 = vmatprep.subr.bf16.mxu0 0
      %417 = vmatpush1.bf16.msra.mxu0 0
      %418 = vmatprep.subr.bf16.mxu0 0
      %419 = vmatpush1.bf16.msra.mxu0 0
      %420 = vmatprep.subr.bf16.mxu0 0
      %421 = vmatpush1.bf16.msra.mxu0 0
      %422 = vmatprep.subr.bf16.mxu0 0
      %423 = vmatpush1.bf16.msra.mxu0 0
      %424 = vmatprep.subr.bf16.mxu0 0
      %425 = vmatpush1.bf16.msra.mxu0 0
      %426 = vmatprep.subr.bf16.mxu0 0
      %427 = vmatpush1.bf16.msra.mxu0 0
      %428 = vmatprep.subr.bf16.mxu0 0
      %429 = vmatpush1.bf16.msra.mxu0 0
      %430 = vmatprep.subr.bf16.mxu0 0
      %431 = vmatpush1.bf16.msra.mxu0 0
      %432 = vmatprep.subr.bf16.mxu0 0
      %433 = vmatpush1.bf16.msra.mxu0 0
      %434 = vmatprep.subr.bf16.mxu0 0
      %435 = vmatpush1.bf16.msra.mxu0 0
      %436 = vmatprep.mubr.bf16.mxu0 0
      %437 = vmatmul.mubr.bf16.gmra.mrb[0].mxu0 %v402
      %v438 = vpop.f32.mrb[0].mxu0
      %v439 = vadd.f32 %v372, %v438
      %v440 = vpop.f32.mrb[0].mxu0
      %v441 = vpop.f32.mrb[0].mxu0
      %v442 = vadd.f32 %v375, %v441
      %v443 = vpop.f32.mrb[0].mxu0
      %444 = vdwg.mxu0
      %s445 = scalar_lea.vmem %s1, 64
      %v446 = vld [vmem:[%s445] sm:$0xf]
      %v447 = vld [vmem:[%s445 + $0x4] sm:$0xf]
      %v448 = vld [vmem:[%s445 + $0x8] sm:$0xf]
      %v449 = vld [vmem:[%s445 + $0xc] sm:$0xf]
      %v450 = vld [vmem:[%s445 + $0x10] sm:$0xf]
      %v451 = vld [vmem:[%s445 + $0x14] sm:$0xf]
      %v452 = vld [vmem:[%s445 + $0x18] sm:$0xf]
      %v453 = vld [vmem:[%s445 + $0x1c] sm:$0xf]
      %vm454 = vcmask 1046528
      %v455 = vrot.slane %v294, 1
      %v456 = vrot.slane %v295, 1
      %v457 = vsel %vm454, %v455, %v456
      %v466 = vunpack.c.l.b16 %v446
      %v467 = vunpack.c.l.b16 %v447
      %v468 = vunpack.c.l.b16 %v448
      %v469 = vunpack.c.l.b16 %v449
      %v470 = vunpack.c.l.b16 %v450
      %v471 = vunpack.c.l.b16 %v451
      %v472 = vunpack.c.l.b16 %v452
      %v473 = vunpack.c.l.b16 %v453
      %v474 = vpack.c.b16 %v467, %v466
      %v475 = vpack.c.b16 %v469, %v468
      %v476 = vpack.c.b16 %v471, %v470
      %v477 = vpack.c.b16 %v473, %v472
      %v483 = vsel %vm333, %v457, 0
      %485 = vmatprep.subr.bf16.mxu0 0
      %486 = vmatpush1.bf16.msra.mxu0 %v474
      %487 = vmatprep.subr.bf16.mxu0 0
      %488 = vmatpush1.bf16.msra.mxu0 %v475
      %489 = vmatprep.subr.bf16.mxu0 0
      %490 = vmatpush1.bf16.msra.mxu0 %v476
      %491 = vmatprep.subr.bf16.mxu0 0
      %492 = vmatpush1.bf16.msra.mxu0 %v477
      %493 = vmatprep.subr.bf16.mxu0 0
      %494 = vmatpush1.bf16.msra.mxu0 0
      %495 = vmatprep.subr.bf16.mxu0 0
      %496 = vmatpush1.bf16.msra.mxu0 0
      %497 = vmatprep.subr.bf16.mxu0 0
      %498 = vmatpush1.bf16.msra.mxu0 0
      %499 = vmatprep.subr.bf16.mxu0 0
      %500 = vmatpush1.bf16.msra.mxu0 0
      %501 = vmatprep.subr.bf16.mxu0 0
      %502 = vmatpush1.bf16.msra.mxu0 0
      %503 = vmatprep.subr.bf16.mxu0 0
      %504 = vmatpush1.bf16.msra.mxu0 0
      %505 = vmatprep.subr.bf16.mxu0 0
      %506 = vmatpush1.bf16.msra.mxu0 0
      %507 = vmatprep.subr.bf16.mxu0 0
      %508 = vmatpush1.bf16.msra.mxu0 0
      %509 = vmatprep.subr.bf16.mxu0 0
      %510 = vmatpush1.bf16.msra.mxu0 0
      %511 = vmatprep.subr.bf16.mxu0 0
      %512 = vmatpush1.bf16.msra.mxu0 0
      %513 = vmatprep.subr.bf16.mxu0 0
      %514 = vmatpush1.bf16.msra.mxu0 0
      %515 = vmatprep.subr.bf16.mxu0 0
      %516 = vmatpush1.bf16.msra.mxu0 0
      %517 = vmatprep.mubr.bf16.mxu0 0
      %518 = vmatmul.mubr.bf16.gmra.mrb[0].mxu0 %v483
      %v519 = vpop.f32.mrb[0].mxu0
      %v520 = vadd.f32 0.0, %v519
      %v521 = vpop.f32.mrb[0].mxu0
      %v522 = vpop.f32.mrb[0].mxu0
      %v523 = vadd.f32 0.0, %v522
      %v524 = vpop.f32.mrb[0].mxu0
      %525 = vdwg.mxu0
      %v526 = vadd.f32 %v439, %v520
      %v527 = vadd.f32 %v442, %v523
      %v528 = vld [vmem:[%s3] sm:$0x1]
      %v530 = vlaneseq
      %v531 = vshrl.u32 %v530, 7
      %v532 = vsub.s32 0, %v531
      %v533 = vrot.slane %v528, %v532
      %v535 = vadd.f32 %v526, %v533
      %v536 = vadd.f32 %v527, %v533
      %v537 = vmax.f32 %v535, 0.0
      %v538 = vmax.f32 %v536, 0.0
      %v539 = vpack.c.bf16 %v538, %v537
      %v540 = vld [vmem:[%s2] sm:$0xff]
      %v541 = vld [vmem:[%s2 + $0x8] sm:$0xff]
      %v542 = vld [vmem:[%s2 + $0x10] sm:$0xff]
      %v543 = vld [vmem:[%s2 + $0x18] sm:$0xff]
      %v544 = vld [vmem:[%s2 + $0x20] sm:$0xff]
      %v545 = vld [vmem:[%s2 + $0x28] sm:$0xff]
      %v546 = vld [vmem:[%s2 + $0x30] sm:$0xff]
      %v547 = vld [vmem:[%s2 + $0x38] sm:$0xff]
      %v548 = vld [vmem:[%s2 + $0x40] sm:$0xff]
      %v549 = vld [vmem:[%s2 + $0x48] sm:$0xff]
      %v550 = vld [vmem:[%s2 + $0x50] sm:$0xff]
      %v551 = vld [vmem:[%s2 + $0x58] sm:$0xff]
      %v552 = vld [vmem:[%s2 + $0x60] sm:$0xff]
      %v553 = vld [vmem:[%s2 + $0x68] sm:$0xff]
      %v554 = vld [vmem:[%s2 + $0x70] sm:$0xff]
      %v555 = vld [vmem:[%s2 + $0x78] sm:$0xff]
      %v556 = vld [vmem:[%s4] sm:$0x3]
      %v558 = vlaneseq
      %v559 = vshrl.u32 %v558, 7
      %v560 = vsub.s32 0, %v559
      %v561 = vrot.slane %v556, %v560
      %v562 = vlaneseq
      %v563 = vshrl.u32 %v562, 7
      %v564 = vsub.s32 1, %v563
      %v565 = vrot.slane %v556, %v564
      %v584 = vunpack.c.l.b16 %v540
      %v585 = vunpack.c.h.b16 %v540
      %v586 = vunpack.c.l.b16 %v541
      %v587 = vunpack.c.h.b16 %v541
      %v588 = vunpack.c.l.b16 %v542
      %v589 = vunpack.c.h.b16 %v542
      %v590 = vunpack.c.l.b16 %v543
      %v591 = vunpack.c.h.b16 %v543
      %v592 = vunpack.c.l.b16 %v544
      %v593 = vunpack.c.h.b16 %v544
      %v594 = vunpack.c.l.b16 %v545
      %v595 = vunpack.c.h.b16 %v545
      %v596 = vunpack.c.l.b16 %v546
      %v597 = vunpack.c.h.b16 %v546
      %v598 = vunpack.c.l.b16 %v547
      %v599 = vunpack.c.h.b16 %v547
      %v600 = vunpack.c.l.b16 %v548
      %v601 = vunpack.c.h.b16 %v548
      %v602 = vunpack.c.l.b16 %v549
      %v603 = vunpack.c.h.b16 %v549
      %v604 = vunpack.c.l.b16 %v550
      %v605 = vunpack.c.h.b16 %v550
      %v606 = vunpack.c.l.b16 %v551
      %v607 = vunpack.c.h.b16 %v551
      %v608 = vunpack.c.l.b16 %v552
      %v609 = vunpack.c.h.b16 %v552
      %v610 = vunpack.c.l.b16 %v553
      %v611 = vunpack.c.h.b16 %v553
      %v612 = vunpack.c.l.b16 %v554
      %v613 = vunpack.c.h.b16 %v554
      %v614 = vunpack.c.l.b16 %v555
      %v615 = vunpack.c.h.b16 %v555
      %v616 = vpack.c.b16 %v586, %v584
      %v617 = vpack.c.b16 %v587, %v585
      %v618 = vpack.c.b16 %v590, %v588
      %v619 = vpack.c.b16 %v591, %v589
      %v620 = vpack.c.b16 %v594, %v592
      %v621 = vpack.c.b16 %v595, %v593
      %v622 = vpack.c.b16 %v598, %v596
      %v623 = vpack.c.b16 %v599, %v597
      %v624 = vpack.c.b16 %v602, %v600
      %v625 = vpack.c.b16 %v603, %v601
      %v626 = vpack.c.b16 %v606, %v604
      %v627 = vpack.c.b16 %v607, %v605
      %v628 = vpack.c.b16 %v610, %v608
      %v629 = vpack.c.b16 %v611, %v609
      %v630 = vpack.c.b16 %v614, %v612
      %v631 = vpack.c.b16 %v615, %v613
      %648 = vmatprep.subr.bf16.mxu0 %v617
      %649 = vmatpush1.bf16.msra.mxu0 %v616
      %650 = vmatprep.subr.bf16.mxu0 %v619
      %651 = vmatpush1.bf16.msra.mxu0 %v618
      %652 = vmatprep.subr.bf16.mxu0 %v621
      %653 = vmatpush1.bf16.msra.mxu0 %v620
      %654 = vmatprep.subr.bf16.mxu0 %v623
      %655 = vmatpush1.bf16.msra.mxu0 %v622
      %656 = vmatprep.subr.bf16.mxu0 %v625
      %657 = vmatpush1.bf16.msra.mxu0 %v624
      %658 = vmatprep.subr.bf16.mxu0 %v627
      %659 = vmatpush1.bf16.msra.mxu0 %v626
      %660 = vmatprep.subr.bf16.mxu0 %v629
      %661 = vmatpush1.bf16.msra.mxu0 %v628
      %662 = vmatprep.subr.bf16.mxu0 %v631
      %663 = vmatpush1.bf16.msra.mxu0 %v630
      %664 = vmatprep.subr.bf16.mxu0 0
      %665 = vmatpush1.bf16.msra.mxu0 0
      %666 = vmatprep.subr.bf16.mxu0 0
      %667 = vmatpush1.bf16.msra.mxu0 0
      %668 = vmatprep.subr.bf16.mxu0 0
      %669 = vmatpush1.bf16.msra.mxu0 0
      %670 = vmatprep.subr.bf16.mxu0 0
      %671 = vmatpush1.bf16.msra.mxu0 0
      %672 = vmatprep.subr.bf16.mxu0 0
      %673 = vmatpush1.bf16.msra.mxu0 0
      %674 = vmatprep.subr.bf16.mxu0 0
      %675 = vmatpush1.bf16.msra.mxu0 0
      %676 = vmatprep.subr.bf16.mxu0 0
      %677 = vmatpush1.bf16.msra.mxu0 0
      %678 = vmatprep.subr.bf16.mxu0 0
      %679 = vmatpush1.bf16.msra.mxu0 0
      %680 = vmatprep.mubr.bf16.mxu0 0
      %681 = vmatmul.mubr.bf16.gmra.mrb[0].mxu0 %v539
      %v682 = vpop.f32.mrb[0].mxu0
      %v683 = vadd.f32 %v561, %v682
      %v684 = vpop.f32.mrb[0].mxu0
      %v685 = vadd.f32 %v565, %v684
      %v686 = vpop.f32.mrb[0].mxu0
      %v687 = vadd.f32 %v561, %v686
      %v688 = vpop.f32.mrb[0].mxu0
      %v689 = vadd.f32 %v565, %v688
      %690 = vdwg.mxu0
      %v691 = vmax.f32 %v683, 0.0
      %v692 = vmax.f32 %v685, 0.0
      %v693 = vmax.f32 %v687, 0.0
      %v694 = vmax.f32 %v689, 0.0
      %695 = vst [vmem:[%s224] sm:$0xff] %v691
      %696 = vst [vmem:[%s224 + $0x8] sm:$0xff] %v692
      %697 = vst [vmem:[%s224 + $0x10] sm:$0xff] %v693
      %698 = vst [vmem:[%s224 + $0x18] sm:$0xff] %v694
      %p699 = scmp.lt.s32.totalorder %s16, 1
      %s700 = scalar_select %p699, %s16, 1
      %s701 = smul.addr %s700, 4
      %s702 = smul.addr %s701, 8
      %s703 = scalar_lea.vmem %s5, %s702
      // Predicated region
      $region41: #{_lambda_.1} parent=39 // pred_check
        %p704 = pneg %p144
      $region42: #{_lambda_.1} parent=39 // pred_check_branch
        %706 = sbr.rel (%p704) target = $region44
      $region43: #{_lambda_.1} parent=39 // pred_region
        _
      $region44: #{_lambda_.1} parent=39 // pred_fallthru
        _
    $region40: #{_lambda_.1} parent=5 // pred_fallthru
      _
    %p707 = scmp.le.s32.totalorder 2, %s11
    // Predicated region
    $region45: #{_lambda_.1} parent=5 // pred_check
      %p708 = pneg %p707
    $region46: #{_lambda_.1} parent=5 // pred_check_branch
      %710 = sbr.rel (%p708) target = $region48
    $region47: #{_lambda_.1} parent=5 // pred_region
      %s711 = ssub.s32 %s11, 2
      // Predicated region
      $region49: #{_lambda_.1} parent=47 // pred_check
        %p712 = pneg %p150
      $region50: #{_lambda_.1} parent=47 // pred_check_branch
        %714 = sbr.rel (%p712) target = $region52
      $region51: #{_lambda_.1} parent=47 // pred_region
        %p715 = scmp.lt.s32.totalorder %s17, 1
        %s716 = scalar_select %p715, %s17, 1
        %s717 = smul.addr %s716, 4
        %s718 = smul.addr %s717, 8
        %s719 = scalar_lea.vmem %s5, %s718
      $region52: #{_lambda_.1} parent=47 // pred_fallthru
        _
    $region48: #{_lambda_.1} parent=5 // pred_fallthru
      _
  $region6: #{_lambda_.1} parent=0 // loop_footer
    %s15 = sadd.s32 1, %s11
  $region7: #{_lambda_.1} parent=0 // loop_footer_branch
    %10 = sbr.rel target = $region3
  $region8: #{_lambda_.1} parent=0 // loop_exit
    _

</llo_original>
